<compile_context>
chip_gen: v6e
topology: v6e:2x2x1
jax: 0.10.0
libtpu: 0.0.40
codegen_flags: <defaults>
</compile_context>

<pallas_src>
import math

import jax
import jax.numpy as jnp
from jax.experimental import pallas as pl
from jax.experimental.pallas import tpu as pltpu


_SUBLANE_MULTIPLE = {1: 32, 2: 16, 4: 8, 8: 8}
_VMEM_LIMIT = 32 * 1024 * 1024


def _pick_tile(extent: int, row_bytes: int, itemsize: int, target_bytes: int) -> int:
    """Largest divisor of `extent` that is a multiple of the dtype's sublane
    packing and keeps one tile <= target_bytes.  Falls back to the full extent,
    which is always a legal block shape."""
    sub = _SUBLANE_MULTIPLE.get(itemsize, 8)
    limit = max(sub, target_bytes // max(1, row_bytes))
    if extent <= limit or extent % sub != 0:
        return extent
    cand = min(extent, (limit // sub) * sub)
    while cand >= sub:
        if extent % cand == 0:
            return cand
        cand -= sub
    return extent


def _depthcat_slab_kernel(t_ref, x_ref, o_ref):
    # t_ref : SMEM (1,) float32 scalar (depth variable t)
    # x_ref : VMEM tile (1, C,   r_tile, lane)
    # o_ref : VMEM tile (1, C+1, r_tile, lane)
    c = x_ref.shape[1]
    o_ref[:, :c, :, :] = x_ref[...]
    fill_shape = (o_ref.shape[0], o_ref.shape[1] - c) + tuple(o_ref.shape[2:])
    o_ref[:, c:, :, :] = jnp.full(fill_shape, t_ref[0], dtype=o_ref.dtype)


def _depthcat_chan_kernel(t_ref, x_ref, o_ref):
    # Fallback for very large channel counts: one channel per grid step.
    j = pl.program_id(2)
    c = pl.num_programs(2) - 1  # number of input channels along the concat axis

    @pl.when(j < c)
    def _copy():
        o_ref[...] = x_ref[...]

    @pl.when(j == c)
    def _fill():
        o_ref[...] = jnp.full(o_ref.shape, t_ref[0], dtype=o_ref.dtype)


def _depthcat_lastdim_kernel(t_ref, x_ref, o_ref):
    # x_ref : VMEM tile (b_tile, C), o_ref : VMEM tile (b_tile, C+1)
    c = x_ref.shape[1]
    o_ref[:, :c] = x_ref[...]
    o_ref[:, c:] = jnp.full((o_ref.shape[0], o_ref.shape[1] - c), t_ref[0],
                            dtype=o_ref.dtype)


def depth_cat(x, t, idx_cat: int = 1, *, target_block_bytes: int = 2 << 20):
    """Pallas implementation of DepthCat.forward for arbitrary-rank inputs."""
    shape = x.shape
    ndim = x.ndim
    if ndim < 1:
        raise ValueError("depth_cat expects at least a 1D input")
    axis = idx_cat if idx_cat >= 0 else idx_cat + ndim
    if not 0 <= axis < ndim:
        raise ValueError(f"idx_cat={idx_cat} out of range for rank-{ndim} input")

    # Collapse dims around the concat axis: (B, C, M). Pure reshape, no transpose.
    b_outer = math.prod(shape[:axis]) if axis > 0 else 1
    c_cat = int(shape[axis])
    m_inner = math.prod(shape[axis + 1:]) if axis + 1 < ndim else 1

    itemsize = x.dtype.itemsize
    sub = _SUBLANE_MULTIPLE.get(itemsize, 8)
    # Keep t as float32 in SMEM; cast to the output dtype inside the kernel.
    t_arr = jnp.asarray([t], dtype=jnp.float32)

    out_shape_full = list(shape)
    out_shape_full[axis] = c_cat + 1

    # --- Path C: concat axis is (effectively) the last axis -------------------
    if m_inner == 1:
        x2 = x.reshape(b_outer, c_cat)
        b_tile = _pick_tile(b_outer, (c_cat + 1) * itemsize, itemsize,
                            target_block_bytes)
        out2 = pl.pallas_call(
            _depthcat_lastdim_kernel,
            out_shape=jax.ShapeDtypeStruct((b_outer, c_cat + 1), x.dtype),
            grid=(b_outer // b_tile,),
            in_specs=[
                pl.BlockSpec(memory_space=pltpu.MemorySpace.SMEM),
                pl.BlockSpec((b_tile, c_cat), lambda i: (i, 0)),
            ],
            out_specs=pl.BlockSpec((b_tile, c_cat + 1), lambda i: (i, 0)),
            compiler_params=pltpu.CompilerParams(
                dimension_semantics=("parallel",),
                vmem_limit_bytes=_VMEM_LIMIT,
            ),
        )(t_arr, x2)
        return out2.reshape(out_shape_full)

    # Lane-dense factorisation of the trailing elements: M = M_rows * LANE.
    if m_inner >= 128 and m_inner % 128 == 0:
        lane = 128
    else:
        lane = m_inner
    m_rows = m_inner // lane

    x4 = x.reshape(b_outer, c_cat, m_rows, lane)
    out4_shape = (b_outer, c_cat + 1, m_rows, lane)
    slab_min_bytes = c_cat * min(m_rows, sub) * lane * itemsize

    if slab_min_bytes <= 2 * target_block_bytes:
        # --- Path A: full channel slab per grid step (copy + fill in one) -----
        r_tile = _pick_tile(m_rows, c_cat * lane * itemsize, itemsize,
                            target_block_bytes)
        out4 = pl.pallas_call(
            _depthcat_slab_kernel,
            out_shape=jax.ShapeDtypeStruct(out4_shape, x.dtype),
            grid=(b_outer, m_rows // r_tile),
            in_specs=[
                pl.BlockSpec(memory_space=pltpu.MemorySpace.SMEM),
                pl.BlockSpec((1, c_cat, r_tile, lane), lambda b, r: (b, 0, r, 0)),
            ],
            out_specs=pl.BlockSpec((1, c_cat + 1, r_tile, lane),
                                   lambda b, r: (b, 0, r, 0)),
            compiler_params=pltpu.CompilerParams(
                dimension_semantics=("parallel", "parallel"),
                vmem_limit_bytes=_VMEM_LIMIT,
            ),
        )(t_arr, x4)
    else:
        # --- Path B: channel-grid fallback for very large channel counts ------
        r_tile = _pick_tile(m_rows, lane * itemsize, itemsize, target_block_bytes)
        out4 = pl.pallas_call(
            _depthcat_chan_kernel,
            out_shape=jax.ShapeDtypeStruct(out4_shape, x.dtype),
            grid=(b_outer, m_rows // r_tile, c_cat + 1),
            in_specs=[
                pl.BlockSpec(memory_space=pltpu.MemorySpace.SMEM),
                pl.BlockSpec((1, 1, r_tile, lane),
                             lambda b, r, j: (b, jnp.minimum(j, c_cat - 1), r, 0)),
            ],
            out_specs=pl.BlockSpec((1, 1, r_tile, lane),
                                   lambda b, r, j: (b, j, r, 0)),
            compiler_params=pltpu.CompilerParams(
                dimension_semantics=("parallel", "parallel", "arbitrary"),
                vmem_limit_bytes=_VMEM_LIMIT,
            ),
        )(t_arr, x4)

    return out4.reshape(out_shape_full)


def _reference(x, t, axis):
    tshape = list(x.shape)
    tshape[axis] = 1
    t_fill = jnp.full(tshape, jnp.float32(t)).astype(x.dtype)
    return jnp.concatenate([x, t_fill], axis=axis)


if __name__ == "__main__":
    key = jax.random.PRNGKey(0)
    t = 0.37  # depth variable set by the ODE solver each call (module attribute .t)

    # Small NCHW input consistent with a conv-style DEFunc: batch=2, channels=4, 16x16.
    x = jax.random.normal(key, (2, 4, 16, 16), dtype=jnp.float32)

    # Default torchdyn usage: concat t along the channel axis (idx_cat=1). Slab path.
    y = jax.block_until_ready(depth_cat(x, t, idx_cat=1))
    assert y.shape == (2, 5, 16, 16) and y.dtype == x.dtype, (y.shape, y.dtype)
    assert jnp.allclose(y, _reference(x, t, 1)), "mismatch (idx_cat=1)"

    # Concat along axis 0 (same kernel via reshape; no transpose).
    y0 = jax.block_until_ready(depth_cat(x, t, idx_cat=0))
    assert y0.shape == (3, 4, 16, 16), y0.shape
    assert jnp.allclose(y0, _reference(x, t, 0)), "mismatch (idx_cat=0)"

    # Concat along a middle spatial axis (short, non-128 lane extent).
    y2 = jax.block_until_ready(depth_cat(x, t, idx_cat=2))
    assert y2.shape == (2, 4, 17, 16), y2.shape
    assert jnp.allclose(y2, _reference(x, t, 2)), "mismatch (idx_cat=2)"

    # Concat along the last axis (dedicated 2D path, MLP-style).
    ym1 = jax.block_until_ready(depth_cat(x, t, idx_cat=-1))
    assert ym1.shape == (2, 4, 16, 17), ym1.shape
    assert jnp.allclose(ym1, _reference(x, t, 3)), "mismatch (idx_cat=-1)"

    # bf16 input (sublane packing = 16).
    xb = x.astype(jnp.bfloat16)
    yb = jax.block_until_ready(depth_cat(xb, t, idx_cat=1))
    assert yb.dtype == jnp.bfloat16 and yb.shape == (2, 5, 16, 16)
    assert jnp.allclose(yb.astype(jnp.float32),
                        _reference(xb, t, 1).astype(jnp.float32)), "mismatch (bf16)"

    # Force row-tiling in the slab path (small VMEM target).
    x_big = jax.random.normal(key, (1, 2, 256, 256), dtype=jnp.float32)
    yt = jax.block_until_ready(depth_cat(x_big, t, idx_cat=1,
                                         target_block_bytes=64 * 1024))
    assert yt.shape == (1, 3, 256, 256)
    assert jnp.allclose(yt, _reference(x_big, t, 1)), "mismatch (row-tiled slab)"

    # Force the channel-grid fallback path (tiny VMEM target).
    x_ch = jax.random.normal(key, (2, 8, 8, 128), dtype=jnp.float32)
    yc = jax.block_until_ready(depth_cat(x_ch, t, idx_cat=1,
                                         target_block_bytes=4096))
    assert yc.shape == (2, 9, 8, 128)
    assert jnp.allclose(yc, _reference(x_ch, t, 1)), "mismatch (channel-grid fallback)"

    print("KERNEL_OK")
</pallas_src>

<mosaic_0001>
module attributes {stable_mosaic.version = 11 : i64} {
  func.func @_depthcat_slab_kernel(%arg0: i32, %arg1: i32, %arg2: memref<1xf32, #tpu.memory_space<smem>>, %arg3: memref<1x4x2x128xf32, #tpu.memory_space<vmem>>, %arg4: memref<1x5x2x128xf32, #tpu.memory_space<vmem>>) attributes {dimension_semantics = [#tpu.dimension_semantics<parallel>, #tpu.dimension_semantics<parallel>], iteration_bounds = array<i64: 2, 1>, scalar_prefetch = 0 : i64, scratch_operands = 0 : i64, tpu.core_type = #tpu.core_type<tc>, window_params = [{transform_indices = @transform_0, window_bounds = array<i64: 1>}, {transform_indices = @transform_1, window_bounds = array<i64: 1, 4, 2, 128>}, {transform_indices = @transform_2, window_bounds = array<i64: 1, 5, 2, 128>}]} {
    %c0 = arith.constant 0 : index
    %c0_0 = arith.constant 0 : index
    %c0_1 = arith.constant 0 : index
    %c0_2 = arith.constant 0 : index
    %0 = vector.load %arg3[%c0, %c0_0, %c0_1, %c0_2] : memref<1x4x2x128xf32, #tpu.memory_space<vmem>>, vector<1x4x2x128xf32>
    %c0_3 = arith.constant 0 : index
    %c0_4 = arith.constant 0 : index
    %c0_5 = arith.constant 0 : index
    %c0_6 = arith.constant 0 : index
    %1 = vector.load %arg4[%c0_3, %c0_4, %c0_5, %c0_6] : memref<1x5x2x128xf32, #tpu.memory_space<vmem>>, vector<1x4x2x128xf32>
    tpu.vector_store %arg4[%c0_3, %c0_4, %c0_5, %c0_6], %0 {strides = array<i32>} : memref<1x5x2x128xf32, #tpu.memory_space<vmem>>, vector<1x4x2x128xf32>,
    %c0_7 = arith.constant 0 : index
    %2 = memref.load %arg2[%c0_7] : memref<1xf32, #tpu.memory_space<smem>>
    %3 = vector.broadcast %2 : f32 to vector<1x1x2x128xf32>
    %c0_8 = arith.constant 0 : index
    %c4 = arith.constant 4 : index
    %c0_9 = arith.constant 0 : index
    %c0_10 = arith.constant 0 : index
    %4 = vector.load %arg4[%c0_8, %c4, %c0_9, %c0_10] : memref<1x5x2x128xf32, #tpu.memory_space<vmem>>, vector<1x1x2x128xf32>
    tpu.vector_store %arg4[%c0_8, %c4, %c0_9, %c0_10], %3 {strides = array<i32>} : memref<1x5x2x128xf32, #tpu.memory_space<vmem>>, vector<1x1x2x128xf32>,
    return
  }
  func.func @transform_0(%arg0: i32, %arg1: i32) -> i32 {
    %c0_i32 = arith.constant 0 : i32
    %c0_i32_0 = arith.constant 0 : i32
    return %c0_i32 : i32
  }
  func.func @transform_1(%arg0: i32, %arg1: i32) -> (i32, i32, i32, i32) {
    %c0_i32 = arith.constant 0 : i32
    %c0_i32_0 = arith.constant 0 : i32
    %c0_i32_1 = arith.constant 0 : i32
    return %arg0, %c0_i32, %arg1, %c0_i32_0 : i32, i32, i32, i32
  }
  func.func @transform_2(%arg0: i32, %arg1: i32) -> (i32, i32, i32, i32) {
    %c0_i32 = arith.constant 0 : i32
    %c0_i32_0 = arith.constant 0 : i32
    %c0_i32_1 = arith.constant 0 : i32
    return %arg0, %c0_i32, %arg1, %c0_i32_0 : i32, i32, i32, i32
  }
}

</mosaic_0001>

<llo_original>
// kernel: tpu_custom_call.1
$region0: #{tpu_custom_call.1}
  #allocation0 [shape = 'u32[]', space=smem, size = 0x4, offset = 0x4, fixed_abs, tag = 'smem constant byte address 0x4 - core index']
  #allocation1 [shape = 'u32[144,128]{1,0:T(1,128)}', space=vmem, size = 0x12000, scoped, tag = 'internal scratch']
  #allocation2 [shape = 'f32[1]{0:T(128)S(6)}', space=smem, size = 0x200, scoped, tag = 'scoped memory for tpu_custom_call.1']
  %s0 = inlined_call_operand.<no memory space> [shape: f32[1], index: 0, kind: input, shape index: {}]
  %s1 = inlined_call_operand.hbm [shape: f32[2,4,2,128], index: 1, kind: input, shape index: {}]
  %s2 = inlined_call_operand.hbm [shape: f32[2,5,2,128], index: 2, kind: output, shape index: {}]
  %s3 = sld [smem:[#allocation0]]
  $region45: #{tpu_custom_call.1} parent=0
    _
  %s5 = ssub.s32 1, %s3
  %s6 = scalar_select 0, %s5, %s3
  %7 = sst [smem:[#allocation2]] %s0
  $region1: #{tpu_custom_call.1} parent=0
    #allocation3 [shape = 'u8[8192]{0}', space=vmem, size = 0x2000, scoped, tag = 'input window, operand 1']
    #allocation4 [shape = 's32[2]{0}', space=sflag, size = 0x8, scoped, tag = 'scoped memory for tpu_custom_call.1']
    #allocation5 [shape = 's32[2]{0}', space=sflag, size = 0x8, scoped, tag = 'scoped memory for tpu_custom_call.1']
    #allocation6 [shape = 'u8[10240]{0}', space=vmem, size = 0x2800, scoped, tag = 'output window, operand 0']
    %8 = vsyncpa [#allocation4], 0
    %s9 = scalar_lea.sflag [#allocation4], 1
    %10 = vsyncpa %s9, 0
    %11 = vsyncpa [#allocation5], 0
    %s12 = scalar_lea.sflag [#allocation5], 1
    %13 = vsyncpa %s12, 0
    loop: start=0, step=1, limit=4
    $region2: #{tpu_custom_call.1} parent=1 // loop_pre_header
      _
    $region3: #{tpu_custom_call.1} parent=1 // loop_header
      %s15 = sphi 0, %s19
      %p16 = scmp.ge.s32.totalorder %s15, 4
      %s22 = sphi 0, %s34
      %s23 = sphi 0, %s30
      %s24 = sphi 0, %s22
      %s25 = sphi 0, %s23
      %s26 = sphi 0, %s24
      %s27 = sphi 0, %s25
      %s35 = sphi 0, %s35
      %s37 = sphi 0, %s35
      %s38 = sphi 0, %s37
      %s52 = sphi 0, %s38
      %s60 = sphi 0, %s62
      %s63 = sphi 0, %s60
      %s64 = sphi 0, %s63
      %s80 = sphi 0, %s64
      %s88 = sphi 0, %s90
      %s91 = sphi 0, %s88
      %s92 = sphi 0, %s91
      %s108 = sphi 0, %s92
    $region4: #{tpu_custom_call.1} parent=1 // loop_header_branch
      %18 = sbr.rel (%p16) target = $region8
    $region5: #{tpu_custom_call.1} parent=1 // loop_body
      %s20 = ssub.s32 %s15, 1
      %s21 = ssub.s32 %s15, 2
      %s28 = sadd.s32 1, %s23
      %p29 = scmp.ge.s32.totalorder %s28, 1
      %s30 = scalar_select %p29, 0, %s28
      %s31 = sadd.s32 1, %s22
      %s32 = scalar_select %p29, %s31, %s22
      %p33 = scmp.ge.s32.totalorder %s32, 2
      %s34 = scalar_select %p33, 0, %s32
      %s36 = sadd.s32 %s35, 1
      %p39 = scmp.eq.s32.totalorder %s15, 1
      %p40 = scmp.ne.s32.totalorder %s35, %s37
      %p41 = scmp.eq.s32.totalorder %s15, 0
      %p42 = por %p40, %p41
      %p43 = scmp.ne.s32.totalorder %s35, %s37
      %p44 = scmp.eq.s32.totalorder %s20, 1
      %p45 = por %p43, %p44
      %p46 = scmp.ne.s32.totalorder %s37, %s38
      %p47 = scmp.eq.s32.totalorder %s20, 0
      %p48 = por %p46, %p47
      %p49 = scmp.ne.s32.totalorder %s37, %s38
      %p50 = scmp.eq.s32.totalorder %s21, 1
      %p51 = por %p49, %p50
      %p53 = scmp.ne.s32.totalorder %s38, %s52
      %p54 = scmp.eq.s32.totalorder %s21, 0
      %p55 = por %p53, %p54
      %s56 = ssub.s32 %s22, %s34
      %s57 = ssub.s32 %s23, %s30
      %s58 = sor.u32 %s56, %s57
      %p59 = scmp.eq.s32.totalorder %s58, 0
      %s61 = sadd.s32 %s60, 1
      %s62 = scalar_select %p59, %s60, %s61
      %p65 = pneg %p59
      %p66 = scmp.eq.s32.totalorder %s15, 1
      %p67 = por %p65, %p66
      %p68 = scmp.ne.s32.totalorder %s60, %s63
      %p69 = scmp.eq.s32.totalorder %s15, 0
      %p70 = por %p68, %p69
      %p71 = scmp.ne.s32.totalorder %s60, %s63
      %p72 = scmp.eq.s32.totalorder %s20, 1
      %p73 = por %p71, %p72
      %p74 = scmp.ne.s32.totalorder %s63, %s64
      %p75 = scmp.eq.s32.totalorder %s20, 0
      %p76 = por %p74, %p75
      %p77 = scmp.ne.s32.totalorder %s63, %s64
      %p78 = scmp.eq.s32.totalorder %s21, 1
      %p79 = por %p77, %p78
      %p81 = scmp.ne.s32.totalorder %s64, %s80
      %p82 = scmp.eq.s32.totalorder %s21, 0
      %p83 = por %p81, %p82
      %s84 = ssub.s32 %s22, %s34
      %s85 = ssub.s32 %s23, %s30
      %s86 = sor.u32 %s84, %s85
      %p87 = scmp.eq.s32.totalorder %s86, 0
      %s89 = sadd.s32 %s88, 1
      %s90 = scalar_select %p87, %s88, %s89
      %p93 = pneg %p87
      %p94 = scmp.eq.s32.totalorder %s15, 1
      %p95 = por %p93, %p94
      %p96 = scmp.ne.s32.totalorder %s88, %s91
      %p97 = scmp.eq.s32.totalorder %s15, 0
      %p98 = por %p96, %p97
      %p99 = scmp.ne.s32.totalorder %s88, %s91
      %p100 = scmp.eq.s32.totalorder %s20, 1
      %p101 = por %p99, %p100
      %p102 = scmp.ne.s32.totalorder %s91, %s92
      %p103 = scmp.eq.s32.totalorder %s20, 0
      %p104 = por %p102, %p103
      %p105 = scmp.ne.s32.totalorder %s91, %s92
      %p106 = scmp.eq.s32.totalorder %s21, 1
      %p107 = por %p105, %p106
      %p109 = scmp.ne.s32.totalorder %s92, %s108
      %p110 = scmp.eq.s32.totalorder %s21, 0
      %p111 = por %p109, %p110
      %p112 = scmp.le.s32.totalorder 1, %s15
      %p113 = scmp.lt.s32.totalorder %s15, 3
      %p114 = pnand %p112, %p113
      %p115 = pneg %p114
      // Predicated region
      $region9: #{tpu_custom_call.1} parent=5 // pred_check
        _
      $region10: #{tpu_custom_call.1} parent=5 // pred_check_branch
        %117 = sbr.rel (%p114) target = $region12
      $region11: #{tpu_custom_call.1} parent=5 // pred_region
        %s118 = ssub.s32 %s15, 1
        // Predicated region
        $region13: #{tpu_custom_call.1} parent=11 // pred_check
          %p119 = pneg %p48
        $region14: #{tpu_custom_call.1} parent=11 // pred_check_branch
          %121 = sbr.rel (%p119) target = $region16
        $region15: #{tpu_custom_call.1} parent=11 // pred_region
          _
        $region16: #{tpu_custom_call.1} parent=11 // pred_fallthru
          _
      $region12: #{tpu_custom_call.1} parent=5 // pred_fallthru
        _
      %p122 = scmp.lt.s32.totalorder %s15, 2
      // Predicated region
      $region17: #{tpu_custom_call.1} parent=5 // pred_check
        %p123 = pneg %p122
      $region18: #{tpu_custom_call.1} parent=5 // pred_check_branch
        %125 = sbr.rel (%p123) target = $region20
      $region19: #{tpu_custom_call.1} parent=5 // pred_region
        // Predicated region
        $region21: #{tpu_custom_call.1} parent=19 // pred_check
          %p126 = pneg %p70
        $region22: #{tpu_custom_call.1} parent=19 // pred_check_branch
          %128 = sbr.rel (%p126) target = $region24
        $region23: #{tpu_custom_call.1} parent=19 // pred_region
          %s129 = sand.u32 %s60, 1
          %s130 = scalar_lea.sflag [#allocation4], %s129
          %s131 = sand.u32 %s60, 1
          %s132 = smul.addr %s131, 8
          %s133 = scalar_lea.vmem [#allocation3], %s132
          %s135 = ssub.s32 128, 128
          %136 = vsyncadd %s130, %s135
          %s137 = smul.addr %s22, 4
          %s138 = sadd.s32 %s23, %s137
          %s139 = smul.addr %s138, 32
          %s140 = scalar_lea.hbm %s1, %s139
          %s141 = sshll.u32 %s133, 4
          %s142 = int_to_ptr.vmem [resolvable:$true] %s141
          %147 = dma.hbm_to_vmem [thread:$0]  %s140, 128, %s142, %s130, 32, 32, 2
        $region24: #{tpu_custom_call.1} parent=19 // pred_fallthru
          _
      $region20: #{tpu_custom_call.1} parent=5 // pred_fallthru
        _
      %p148 = scmp.le.s32.totalorder 1, %s15
      %p149 = scmp.lt.s32.totalorder %s15, 3
      %p150 = pnand %p148, %p149
      %p151 = pneg %p150
      // Predicated region
      $region25: #{tpu_custom_call.1} parent=5 // pred_check
        _
      $region26: #{tpu_custom_call.1} parent=5 // pred_check_branch
        %153 = sbr.rel (%p150) target = $region28
      $region27: #{tpu_custom_call.1} parent=5 // pred_region
        %s154 = ssub.s32 %s15, 1
        %s155 = sand.u32 %s63, 1
        %s156 = scalar_lea.sflag [#allocation4], %s155
        %s157 = sand.u32 %s63, 1
        %s158 = smul.addr %s157, 8
        %s159 = scalar_lea.vmem [#allocation3], %s158
        // Predicated region
        $region29: #{tpu_custom_call.1} parent=27 // pred_check
          %p160 = pneg %p76
        $region30: #{tpu_custom_call.1} parent=27 // pred_check_branch
          %162 = sbr.rel (%p160) target = $region32
        $region31: #{tpu_custom_call.1} parent=27 // pred_region
          %163 = dma.done %s156, 128
        $region32: #{tpu_custom_call.1} parent=27 // pred_fallthru
          _
        %p164 = pneg %p48
        %p165 = pneg %p45
        %s166 = sand.u32 %s63, 1
        %s167 = scalar_lea.sflag [#allocation4], %s166
        %s168 = sand.u32 %s63, 1
        %s169 = smul.addr %s168, 8
        %s170 = scalar_lea.vmem [#allocation3], %s169
        %p171 = pneg %p76
        %p172 = pneg %p73
        %p173 = pneg %p104
        %p174 = pneg %p101
        %s175 = sand.u32 %s91, 1
        %s176 = scalar_lea.sflag [#allocation5], %s175
        %s177 = sand.u32 %s91, 1
        %s178 = smul.addr %s177, 10
        %s179 = scalar_lea.vmem [#allocation6], %s178
        %v180 = vld [vmem:[%s159] sm:$0x3]
        %v181 = vld [vmem:[%s159 + $0x2] sm:$0x3]
        %v182 = vld [vmem:[%s159 + $0x4] sm:$0x3]
        %v183 = vld [vmem:[%s159 + $0x6] sm:$0x3]
        %184 = vst [vmem:[%s179] sm:$0x3] %v180
        %185 = vst [vmem:[%s179 + $0x2] sm:$0x3] %v181
        %186 = vst [vmem:[%s179 + $0x4] sm:$0x3] %v182
        %187 = vst [vmem:[%s179 + $0x6] sm:$0x3] %v183
        %s188 = sld [smem:[#allocation2]]
        %v189 = vstv %s188
        %s190 = scalar_lea.vmem %s179, 8 [#allocation6]
        %191 = vst [vmem:[%s190] sm:$0x3] %v189
        %s192 = sand.u32 %s91, 1
        %s193 = scalar_lea.sflag [#allocation5], %s192
        %s194 = sand.u32 %s91, 1
        %s195 = smul.addr %s194, 10
        %s196 = scalar_lea.vmem [#allocation6], %s195
        // Predicated region
        $region33: #{tpu_custom_call.1} parent=27 // pred_check
          %p197 = pneg %p101
        $region34: #{tpu_custom_call.1} parent=27 // pred_check_branch
          %199 = sbr.rel (%p197) target = $region36
        $region35: #{tpu_custom_call.1} parent=27 // pred_region
          %s201 = ssub.s32 160, 160
          %202 = vsyncadd %s193, %s201
          %s203 = smul.addr %s24, 5
          %s204 = sadd.s32 %s25, %s203
          %s205 = smul.addr %s204, 32
          %s206 = scalar_lea.hbm %s2, %s205
          %s207 = sshll.u32 %s196, 4
          %s208 = int_to_ptr.vmem [resolvable:$true] %s207
          %213 = dma.vmem_to_hbm [thread:$0]  %s208, 160, %s206, %s193, 32, 32, 2
        $region36: #{tpu_custom_call.1} parent=27 // pred_fallthru
          _
      $region28: #{tpu_custom_call.1} parent=5 // pred_fallthru
        _
      %p214 = scmp.le.s32.totalorder 2, %s15
      // Predicated region
      $region37: #{tpu_custom_call.1} parent=5 // pred_check
        %p215 = pneg %p214
      $region38: #{tpu_custom_call.1} parent=5 // pred_check_branch
        %217 = sbr.rel (%p215) target = $region40
      $region39: #{tpu_custom_call.1} parent=5 // pred_region
        %s218 = ssub.s32 %s15, 2
        // Predicated region
        $region41: #{tpu_custom_call.1} parent=39 // pred_check
          %p219 = pneg %p107
        $region42: #{tpu_custom_call.1} parent=39 // pred_check_branch
          %221 = sbr.rel (%p219) target = $region44
        $region43: #{tpu_custom_call.1} parent=39 // pred_region
          %s222 = sand.u32 %s92, 1
          %s223 = scalar_lea.sflag [#allocation5], %s222
          %s224 = sand.u32 %s92, 1
          %s225 = smul.addr %s224, 10
          %s226 = scalar_lea.vmem [#allocation6], %s225
          %227 = dma.done %s223, 160
        $region44: #{tpu_custom_call.1} parent=39 // pred_fallthru
          _
      $region40: #{tpu_custom_call.1} parent=5 // pred_fallthru
        _
    $region6: #{tpu_custom_call.1} parent=1 // loop_footer
      %s19 = sadd.s32 1, %s15
    $region7: #{tpu_custom_call.1} parent=1 // loop_footer_branch
      %14 = sbr.rel target = $region3
    $region8: #{tpu_custom_call.1} parent=1 // loop_exit
      _
    %228 = vsyncpa [#allocation4], 1
    %s229 = scalar_lea.sflag [#allocation4], 1
    %230 = vsyncpa %s229, 1
    %231 = vsyncpa [#allocation5], 1
    %s232 = scalar_lea.sflag [#allocation5], 1
    %233 = vsyncpa %s232, 1

</llo_original>
